<compile_context>
chip_gen: v5e
topology: v5e:2x2
jax: 0.10.0
libtpu: 0.0.40
codegen_flags: <defaults>
</compile_context>

<pallas_src>
import functools

import jax
import jax.numpy as jnp
from jax import lax
from jax.experimental import pallas as pl
from jax.experimental.pallas import tpu as pltpu


def add_instancenorm_kernel(x1_ref, x2_ref, g_ref, b_ref, o_ref, *, eps):
    # x1_ref / x2_ref / o_ref: (tb, S, te);  g_ref / b_ref: (1, te)
    x = x1_ref[...].astype(jnp.float32) + x2_ref[...].astype(jnp.float32)
    mean = jnp.mean(x, axis=1, keepdims=True)                   # (tb, 1, te)
    centered = x - mean                                         # two-pass var (PyTorch parity)
    var = jnp.mean(centered * centered, axis=1, keepdims=True)  # biased variance
    inv = lax.rsqrt(var + eps)                                  # EUP rsqrt (free slot)
    gamma = g_ref[...]                                          # (1, te)
    beta = b_ref[...]
    scale = gamma[None, :, :] * inv                             # (tb, 1, te)
    shift = beta[None, :, :] - mean * scale
    o_ref[...] = (x * scale + shift).astype(o_ref.dtype)


def _round_up(x, m):
    return (x + m - 1) // m * m


def add_and_instance_norm(x1, x2, gamma, beta, *, eps=1e-5,
                          vmem_budget_bytes=16 << 20):
    """x1, x2: (B, S, E); gamma, beta: (E,). Returns (B, S, E)."""
    assert x1.shape == x2.shape
    B, S, E = x1.shape
    itemsize = jnp.dtype(x1.dtype).itemsize

    # --- E tiling (only for large E; POMO uses E=128 -> single full tile). ---
    if E > 512 and E % 128 == 0:
        te = 256 if E % 256 == 0 else 128
    else:
        te = E
    # TODO(synk): if E is ever large and NOT a multiple of 128, pad E on the
    # wrapper side to keep stores lane-dense; not needed for POMO (E=128).
    n_e = pl.cdiv(E, te)

    # --- Batch tile from a VMEM budget. ---
    # Per batch row per E-tile: 2 inputs + 1 output, each double-buffered by
    # the pipeline, plus ~2 full-tile f32 temporaries (x, centered) inside the
    # kernel.  S pads up to a multiple of 8 sublanes.
    s_pad = _round_up(S, 8)
    per_batch_bytes = s_pad * te * (itemsize * 3 * 2 + 4 * 2)
    tb = max(1, min(B, vmem_budget_bytes // per_batch_bytes))
    # Keep >= 2 blocks so the parallel grid axis can shard across both
    # TensorCores on v7x; harmless on single-TC chips.
    if n_e == 1 and B >= 2:
        tb = min(tb, pl.cdiv(B, 2))
    n_b = pl.cdiv(B, tb)  # ragged last block: Pallas masks out-of-range stores

    # Explicit scoped-VMEM limit sized to the real footprint (IO double
    # buffers + f32 temps + gamma/beta) with a little headroom.
    vmem_limit = int(tb * per_batch_bytes + 4 * te * 4 + (2 << 20))
    vmem_limit = min(vmem_limit, 56 << 20)   # stay under v7x's 64 MiB per TC

    g2 = gamma.reshape(1, E).astype(jnp.float32)
    b2 = beta.reshape(1, E).astype(jnp.float32)

    kernel = functools.partial(add_instancenorm_kernel, eps=eps)

    flops = 6 * B * S * E                      # add, sub, mul, 2 reduces, fused affine
    bytes_accessed = 3 * B * S * E * itemsize + 2 * E * 4

    out = pl.pallas_call(
        kernel,
        out_shape=jax.ShapeDtypeStruct((B, S, E), x1.dtype),
        grid_spec=pltpu.PrefetchScalarGridSpec(
            num_scalar_prefetch=0,
            grid=(n_b, n_e),
            in_specs=[
                pl.BlockSpec((tb, S, te), lambda i, j: (i, 0, j)),  # input1 tile
                pl.BlockSpec((tb, S, te), lambda i, j: (i, 0, j)),  # input2 tile
                pl.BlockSpec((1, te), lambda i, j: (0, j)),          # gamma
                pl.BlockSpec((1, te), lambda i, j: (0, j)),          # beta
            ],
            out_specs=pl.BlockSpec((tb, S, te), lambda i, j: (i, 0, j)),
        ),
        compiler_params=pltpu.CompilerParams(
            dimension_semantics=("parallel", "parallel"),
            vmem_limit_bytes=vmem_limit,
        ),
        cost_estimate=pl.CostEstimate(
            flops=flops, transcendentals=B * E, bytes_accessed=bytes_accessed),
    )(x1, x2, g2, b2)

    return out


if __name__ == "__main__":
    # Small, module-consistent shapes: (batch, seq/problem, embedding_dim).
    # embedding_dim=128 matches POMO and keeps stores lane-dense.
    batch, seq, embedding_dim = 2, 20, 128
    eps = 1e-5

    key = jax.random.PRNGKey(0)
    k1, k2, k3, k4 = jax.random.split(key, 4)

    x1 = jax.random.normal(k1, (batch, seq, embedding_dim), dtype=jnp.float32)
    x2 = jax.random.normal(k2, (batch, seq, embedding_dim), dtype=jnp.float32)
    # InstanceNorm1d(affine=True) default init is gamma=1, beta=0; perturb so
    # the affine path is actually exercised.
    gamma = 1.0 + 0.1 * jax.random.normal(k3, (embedding_dim,), dtype=jnp.float32)
    beta = 0.1 * jax.random.normal(k4, (embedding_dim,), dtype=jnp.float32)

    out = add_and_instance_norm(x1, x2, gamma, beta, eps=eps)
    out = jax.block_until_ready(out)

    # Pure-JAX reference (same math as the PyTorch module; transposes fold away).
    added = x1 + x2
    mean = added.mean(axis=1, keepdims=True)
    var = added.var(axis=1, keepdims=True)          # biased, like InstanceNorm
    ref = (added - mean) / jnp.sqrt(var + eps) * gamma + beta

    assert out.shape == x1.shape
    assert jnp.allclose(out, ref, atol=1e-4, rtol=1e-4)

    print("KERNEL_OK")
</pallas_src>

<mosaic_0001>
module attributes {stable_mosaic.version = 11 : i64} {
  func.func @add_instancenorm_kernel(%arg0: i32, %arg1: i32, %arg2: memref<1x20x128xf32, #tpu.memory_space<vmem>>, %arg3: memref<1x20x128xf32, #tpu.memory_space<vmem>>, %arg4: memref<1x128xf32, #tpu.memory_space<vmem>>, %arg5: memref<1x128xf32, #tpu.memory_space<vmem>>, %arg6: memref<1x20x128xf32, #tpu.memory_space<vmem>>) attributes {dimension_semantics = [#tpu.dimension_semantics<parallel>, #tpu.dimension_semantics<parallel>], iteration_bounds = array<i64: 2, 1>, scalar_prefetch = 0 : i64, scratch_operands = 0 : i64, tpu.core_type = #tpu.core_type<tc>, window_params = [{transform_indices = @transform_0, window_bounds = array<i64: 1, 20, 128>}, {transform_indices = @transform_1, window_bounds = array<i64: 1, 20, 128>}, {transform_indices = @transform_2, window_bounds = array<i64: 1, 128>}, {transform_indices = @transform_3, window_bounds = array<i64: 1, 128>}, {transform_indices = @transform_4, window_bounds = array<i64: 1, 20, 128>}]} {
    %c0 = arith.constant 0 : index
    %c0_0 = arith.constant 0 : index
    %c0_1 = arith.constant 0 : index
    %0 = vector.load %arg2[%c0, %c0_0, %c0_1] : memref<1x20x128xf32, #tpu.memory_space<vmem>>, vector<1x20x128xf32>
    %c0_2 = arith.constant 0 : index
    %c0_3 = arith.constant 0 : index
    %c0_4 = arith.constant 0 : index
    %1 = vector.load %arg3[%c0_2, %c0_3, %c0_4] : memref<1x20x128xf32, #tpu.memory_space<vmem>>, vector<1x20x128xf32>
    %2 = arith.addf %0, %1 : vector<1x20x128xf32>
    %cst = arith.constant dense<0.000000e+00> : vector<1x128xf32>
    %3 = vector.multi_reduction <add>, %2, %cst [1] : vector<1x20x128xf32> to vector<1x128xf32>
    %4 = vector.shape_cast %3 : vector<1x128xf32> to vector<1x1x128xf32>
    %cst_5 = arith.constant 2.000000e+01 : f32
    %5 = vector.broadcast %cst_5 : f32 to vector<1x1x128xf32>
    %6 = arith.divf %4, %5 : vector<1x1x128xf32>
    %7 = vector.broadcast %6 : vector<1x1x128xf32> to vector<1x20x128xf32>
    %8 = arith.subf %2, %7 : vector<1x20x128xf32>
    %9 = arith.mulf %8, %8 : vector<1x20x128xf32>
    %cst_6 = arith.constant dense<0.000000e+00> : vector<1x128xf32>
    %10 = vector.multi_reduction <add>, %9, %cst_6 [1] : vector<1x20x128xf32> to vector<1x128xf32>
    %11 = vector.shape_cast %10 : vector<1x128xf32> to vector<1x1x128xf32>
    %cst_7 = arith.constant 2.000000e+01 : f32
    %12 = vector.broadcast %cst_7 : f32 to vector<1x1x128xf32>
    %13 = arith.divf %11, %12 : vector<1x1x128xf32>
    %cst_8 = arith.constant 9.99999974E-6 : f32
    %14 = vector.broadcast %cst_8 : f32 to vector<1x1x128xf32>
    %15 = arith.addf %13, %14 : vector<1x1x128xf32>
    %16 = math.rsqrt %15 : vector<1x1x128xf32>
    %c0_9 = arith.constant 0 : index
    %c0_10 = arith.constant 0 : index
    %17 = vector.load %arg4[%c0_9, %c0_10] : memref<1x128xf32, #tpu.memory_space<vmem>>, vector<1x128xf32>
    %c0_11 = arith.constant 0 : index
    %c0_12 = arith.constant 0 : index
    %18 = vector.load %arg5[%c0_11, %c0_12] : memref<1x128xf32, #tpu.memory_space<vmem>>, vector<1x128xf32>
    %19 = vector.shape_cast %17 : vector<1x128xf32> to vector<1x1x128xf32>
    %20 = arith.mulf %19, %16 : vector<1x1x128xf32>
    %21 = vector.shape_cast %18 : vector<1x128xf32> to vector<1x1x128xf32>
    %22 = arith.mulf %6, %20 : vector<1x1x128xf32>
    %23 = arith.subf %21, %22 : vector<1x1x128xf32>
    %24 = vector.broadcast %20 : vector<1x1x128xf32> to vector<1x20x128xf32>
    %25 = arith.mulf %2, %24 : vector<1x20x128xf32>
    %26 = vector.broadcast %23 : vector<1x1x128xf32> to vector<1x20x128xf32>
    %27 = arith.addf %25, %26 : vector<1x20x128xf32>
    %c0_13 = arith.constant 0 : index
    %c0_14 = arith.constant 0 : index
    %c0_15 = arith.constant 0 : index
    %28 = vector.load %arg6[%c0_13, %c0_14, %c0_15] : memref<1x20x128xf32, #tpu.memory_space<vmem>>, vector<1x20x128xf32>
    tpu.vector_store %arg6[%c0_13, %c0_14, %c0_15], %27 {strides = array<i32>} : memref<1x20x128xf32, #tpu.memory_space<vmem>>, vector<1x20x128xf32>,
    return
  }
  func.func @transform_0(%arg0: i32, %arg1: i32) -> (i32, i32, i32) {
    %c0_i32 = arith.constant 0 : i32
    %c0_i32_0 = arith.constant 0 : i32
    return %arg0, %c0_i32, %arg1 : i32, i32, i32
  }
  func.func @transform_1(%arg0: i32, %arg1: i32) -> (i32, i32, i32) {
    %c0_i32 = arith.constant 0 : i32
    %c0_i32_0 = arith.constant 0 : i32
    return %arg0, %c0_i32, %arg1 : i32, i32, i32
  }
  func.func @transform_2(%arg0: i32, %arg1: i32) -> (i32, i32) {
    %c0_i32 = arith.constant 0 : i32
    %c0_i32_0 = arith.constant 0 : i32
    return %c0_i32, %arg1 : i32, i32
  }
  func.func @transform_3(%arg0: i32, %arg1: i32) -> (i32, i32) {
    %c0_i32 = arith.constant 0 : i32
    %c0_i32_0 = arith.constant 0 : i32
    return %c0_i32, %arg1 : i32, i32
  }
  func.func @transform_4(%arg0: i32, %arg1: i32) -> (i32, i32, i32) {
    %c0_i32 = arith.constant 0 : i32
    %c0_i32_0 = arith.constant 0 : i32
    return %arg0, %c0_i32, %arg1 : i32, i32, i32
  }
}

</mosaic_0001>

<llo_original>
// kernel: tpu_custom_call.1
$region0: #{tpu_custom_call.1}
  #allocation0 [shape = 'u32[]', space=smem, size = 0x4, offset = 0x4, fixed_abs, tag = 'smem constant byte address 0x4 - core index']
  #allocation1 [shape = 'u32[72,128]{1,0:T(1,128)}', space=vmem, size = 0x9000, scoped, tag = 'internal scratch']
  %s0 = inlined_call_operand.vmem [shape: f32[2,20,128], index: 0, kind: input, shape index: {}]
  %s1 = inlined_call_operand.vmem [shape: f32[2,20,128], index: 1, kind: input, shape index: {}]
  %s2 = inlined_call_operand.vmem [shape: f32[1,128], index: 2, kind: input, shape index: {}]
  %s3 = inlined_call_operand.vmem [shape: f32[1,128], index: 3, kind: input, shape index: {}]
  %s4 = inlined_call_operand.vmem [shape: f32[2,20,128], index: 4, kind: output, shape index: {}]
  %s5 = sld [smem:[#allocation0]]
  $region49: #{tpu_custom_call.1} parent=0
    _
  %s7 = ssub.s32 1, %s5
  %s8 = scalar_select 0, %s7, %s5
  loop: start=0, step=1, limit=4
  $region2: #{tpu_custom_call.1} parent=0 // loop_pre_header
    _
  $region3: #{tpu_custom_call.1} parent=0 // loop_header
    %s10 = sphi 0, %s14
    %p11 = scmp.ge.s32.totalorder %s10, 4
    %s17 = sphi 0, %s29
    %s18 = sphi 0, %s25
    %s19 = sphi 0, %s17
    %s20 = sphi 0, %s18
    %s21 = sphi 0, %s19
    %s22 = sphi 0, %s20
    %s34 = sphi 0, %s36
    %s37 = sphi 0, %s34
    %s38 = sphi 0, %s37
    %s54 = sphi 0, %s38
    %s62 = sphi 0, %s64
    %s65 = sphi 0, %s62
    %s66 = sphi 0, %s65
    %s82 = sphi 0, %s66
    %s88 = sphi 0, %s90
    %s91 = sphi 0, %s88
    %s92 = sphi 0, %s91
    %s108 = sphi 0, %s92
    %s114 = sphi 0, %s116
    %s117 = sphi 0, %s114
    %s118 = sphi 0, %s117
    %s134 = sphi 0, %s118
    %s142 = sphi 0, %s144
    %s145 = sphi 0, %s142
    %s146 = sphi 0, %s145
    %s162 = sphi 0, %s146
  $region4: #{tpu_custom_call.1} parent=0 // loop_header_branch
    %13 = sbr.rel (%p11) target = $region8
  $region5: #{tpu_custom_call.1} parent=0 // loop_body
    %s15 = ssub.s32 %s10, 1
    %s16 = ssub.s32 %s10, 2
    %s23 = sadd.s32 1, %s18
    %p24 = scmp.ge.s32.totalorder %s23, 1
    %s25 = scalar_select %p24, 0, %s23
    %s26 = sadd.s32 1, %s17
    %s27 = scalar_select %p24, %s26, %s17
    %p28 = scmp.ge.s32.totalorder %s27, 2
    %s29 = scalar_select %p28, 0, %s27
    %s30 = ssub.s32 %s17, %s29
    %s31 = ssub.s32 %s18, %s25
    %s32 = sor.u32 %s30, %s31
    %p33 = scmp.eq.s32.totalorder %s32, 0
    %s35 = sadd.s32 %s34, 1
    %s36 = scalar_select %p33, %s34, %s35
    %p39 = pneg %p33
    %p40 = scmp.eq.s32.totalorder %s10, 1
    %p41 = por %p39, %p40
    %p42 = scmp.ne.s32.totalorder %s34, %s37
    %p43 = scmp.eq.s32.totalorder %s10, 0
    %p44 = por %p42, %p43
    %p45 = scmp.ne.s32.totalorder %s34, %s37
    %p46 = scmp.eq.s32.totalorder %s15, 1
    %p47 = por %p45, %p46
    %p48 = scmp.ne.s32.totalorder %s37, %s38
    %p49 = scmp.eq.s32.totalorder %s15, 0
    %p50 = por %p48, %p49
    %p51 = scmp.ne.s32.totalorder %s37, %s38
    %p52 = scmp.eq.s32.totalorder %s16, 1
    %p53 = por %p51, %p52
    %p55 = scmp.ne.s32.totalorder %s38, %s54
    %p56 = scmp.eq.s32.totalorder %s16, 0
    %p57 = por %p55, %p56
    %s58 = ssub.s32 %s17, %s29
    %s59 = ssub.s32 %s18, %s25
    %s60 = sor.u32 %s58, %s59
    %p61 = scmp.eq.s32.totalorder %s60, 0
    %s63 = sadd.s32 %s62, 1
    %s64 = scalar_select %p61, %s62, %s63
    %p67 = pneg %p61
    %p68 = scmp.eq.s32.totalorder %s10, 1
    %p69 = por %p67, %p68
    %p70 = scmp.ne.s32.totalorder %s62, %s65
    %p71 = scmp.eq.s32.totalorder %s10, 0
    %p72 = por %p70, %p71
    %p73 = scmp.ne.s32.totalorder %s62, %s65
    %p74 = scmp.eq.s32.totalorder %s15, 1
    %p75 = por %p73, %p74
    %p76 = scmp.ne.s32.totalorder %s65, %s66
    %p77 = scmp.eq.s32.totalorder %s15, 0
    %p78 = por %p76, %p77
    %p79 = scmp.ne.s32.totalorder %s65, %s66
    %p80 = scmp.eq.s32.totalorder %s16, 1
    %p81 = por %p79, %p80
    %p83 = scmp.ne.s32.totalorder %s66, %s82
    %p84 = scmp.eq.s32.totalorder %s16, 0
    %p85 = por %p83, %p84
    %s86 = ssub.s32 %s18, %s25
    %p87 = scmp.eq.s32.totalorder %s86, 0
    %s89 = sadd.s32 %s88, 1
    %s90 = scalar_select %p87, %s88, %s89
    %p93 = pneg %p87
    %p94 = scmp.eq.s32.totalorder %s10, 1
    %p95 = por %p93, %p94
    %p96 = scmp.ne.s32.totalorder %s88, %s91
    %p97 = scmp.eq.s32.totalorder %s10, 0
    %p98 = por %p96, %p97
    %p99 = scmp.ne.s32.totalorder %s88, %s91
    %p100 = scmp.eq.s32.totalorder %s15, 1
    %p101 = por %p99, %p100
    %p102 = scmp.ne.s32.totalorder %s91, %s92
    %p103 = scmp.eq.s32.totalorder %s15, 0
    %p104 = por %p102, %p103
    %p105 = scmp.ne.s32.totalorder %s91, %s92
    %p106 = scmp.eq.s32.totalorder %s16, 1
    %p107 = por %p105, %p106
    %p109 = scmp.ne.s32.totalorder %s92, %s108
    %p110 = scmp.eq.s32.totalorder %s16, 0
    %p111 = por %p109, %p110
    %s112 = ssub.s32 %s18, %s25
    %p113 = scmp.eq.s32.totalorder %s112, 0
    %s115 = sadd.s32 %s114, 1
    %s116 = scalar_select %p113, %s114, %s115
    %p119 = pneg %p113
    %p120 = scmp.eq.s32.totalorder %s10, 1
    %p121 = por %p119, %p120
    %p122 = scmp.ne.s32.totalorder %s114, %s117
    %p123 = scmp.eq.s32.totalorder %s10, 0
    %p124 = por %p122, %p123
    %p125 = scmp.ne.s32.totalorder %s114, %s117
    %p126 = scmp.eq.s32.totalorder %s15, 1
    %p127 = por %p125, %p126
    %p128 = scmp.ne.s32.totalorder %s117, %s118
    %p129 = scmp.eq.s32.totalorder %s15, 0
    %p130 = por %p128, %p129
    %p131 = scmp.ne.s32.totalorder %s117, %s118
    %p132 = scmp.eq.s32.totalorder %s16, 1
    %p133 = por %p131, %p132
    %p135 = scmp.ne.s32.totalorder %s118, %s134
    %p136 = scmp.eq.s32.totalorder %s16, 0
    %p137 = por %p135, %p136
    %s138 = ssub.s32 %s17, %s29
    %s139 = ssub.s32 %s18, %s25
    %s140 = sor.u32 %s138, %s139
    %p141 = scmp.eq.s32.totalorder %s140, 0
    %s143 = sadd.s32 %s142, 1
    %s144 = scalar_select %p141, %s142, %s143
    %p147 = pneg %p141
    %p148 = scmp.eq.s32.totalorder %s10, 1
    %p149 = por %p147, %p148
    %p150 = scmp.ne.s32.totalorder %s142, %s145
    %p151 = scmp.eq.s32.totalorder %s10, 0
    %p152 = por %p150, %p151
    %p153 = scmp.ne.s32.totalorder %s142, %s145
    %p154 = scmp.eq.s32.totalorder %s15, 1
    %p155 = por %p153, %p154
    %p156 = scmp.ne.s32.totalorder %s145, %s146
    %p157 = scmp.eq.s32.totalorder %s15, 0
    %p158 = por %p156, %p157
    %p159 = scmp.ne.s32.totalorder %s145, %s146
    %p160 = scmp.eq.s32.totalorder %s16, 1
    %p161 = por %p159, %p160
    %p163 = scmp.ne.s32.totalorder %s146, %s162
    %p164 = scmp.eq.s32.totalorder %s16, 0
    %p165 = por %p163, %p164
    %p166 = scmp.le.s32.totalorder 1, %s10
    %p167 = scmp.lt.s32.totalorder %s10, 3
    %p168 = pnand %p166, %p167
    %p169 = pneg %p168
    // Predicated region
    $region9: #{tpu_custom_call.1} parent=5 // pred_check
      _
    $region10: #{tpu_custom_call.1} parent=5 // pred_check_branch
      %171 = sbr.rel (%p168) target = $region12
    $region11: #{tpu_custom_call.1} parent=5 // pred_region
      %s172 = ssub.s32 %s10, 1
      // Predicated region
      $region13: #{tpu_custom_call.1} parent=11 // pred_check
        %p173 = pneg %p104
      $region14: #{tpu_custom_call.1} parent=11 // pred_check_branch
        %175 = sbr.rel (%p173) target = $region16
      $region15: #{tpu_custom_call.1} parent=11 // pred_region
        %p176 = scmp.lt.s32.totalorder %s20, 0
        %s177 = scalar_select %p176, %s20, 0
        %s178 = scalar_lea.vmem %s2, %s177
      $region16: #{tpu_custom_call.1} parent=11 // pred_fallthru
        _
      // Predicated region
      $region17: #{tpu_custom_call.1} parent=11 // pred_check
        %p179 = pneg %p130
      $region18: #{tpu_custom_call.1} parent=11 // pred_check_branch
        %181 = sbr.rel (%p179) target = $region20
      $region19: #{tpu_custom_call.1} parent=11 // pred_region
        %p182 = scmp.lt.s32.totalorder %s20, 0
        %s183 = scalar_select %p182, %s20, 0
        %s184 = scalar_lea.vmem %s3, %s183
      $region20: #{tpu_custom_call.1} parent=11 // pred_fallthru
        _
    $region12: #{tpu_custom_call.1} parent=5 // pred_fallthru
      _
    %p185 = scmp.lt.s32.totalorder %s10, 2
    // Predicated region
    $region21: #{tpu_custom_call.1} parent=5 // pred_check
      %p186 = pneg %p185
    $region22: #{tpu_custom_call.1} parent=5 // pred_check_branch
      %188 = sbr.rel (%p186) target = $region24
    $region23: #{tpu_custom_call.1} parent=5 // pred_region
      // Predicated region
      $region25: #{tpu_custom_call.1} parent=23 // pred_check
        %p189 = pneg %p44
      $region26: #{tpu_custom_call.1} parent=23 // pred_check_branch
        %191 = sbr.rel (%p189) target = $region28
      $region27: #{tpu_custom_call.1} parent=23 // pred_region
        %p192 = scmp.lt.s32.totalorder %s17, 1
        %s193 = scalar_select %p192, %s17, 1
        %p194 = scmp.lt.s32.totalorder %s18, 0
        %s195 = scalar_select %p194, %s18, 0
        %s196 = smul.addr %s193, 3
        %s197 = sadd.s32 %s195, %s196
        %s198 = smul.addr %s197, 8
        %s199 = scalar_lea.vmem %s0, %s198
      $region28: #{tpu_custom_call.1} parent=23 // pred_fallthru
        _
      // Predicated region
      $region29: #{tpu_custom_call.1} parent=23 // pred_check
        %p200 = pneg %p72
      $region30: #{tpu_custom_call.1} parent=23 // pred_check_branch
        %202 = sbr.rel (%p200) target = $region32
      $region31: #{tpu_custom_call.1} parent=23 // pred_region
        %p203 = scmp.lt.s32.totalorder %s17, 1
        %s204 = scalar_select %p203, %s17, 1
        %p205 = scmp.lt.s32.totalorder %s18, 0
        %s206 = scalar_select %p205, %s18, 0
        %s207 = smul.addr %s204, 3
        %s208 = sadd.s32 %s206, %s207
        %s209 = smul.addr %s208, 8
        %s210 = scalar_lea.vmem %s1, %s209
      $region32: #{tpu_custom_call.1} parent=23 // pred_fallthru
        _
    $region24: #{tpu_custom_call.1} parent=5 // pred_fallthru
      _
    %p211 = scmp.le.s32.totalorder 1, %s10
    %p212 = scmp.lt.s32.totalorder %s10, 3
    %p213 = pnand %p211, %p212
    %p214 = pneg %p213
    // Predicated region
    $region33: #{tpu_custom_call.1} parent=5 // pred_check
      _
    $region34: #{tpu_custom_call.1} parent=5 // pred_check_branch
      %216 = sbr.rel (%p213) target = $region36
    $region35: #{tpu_custom_call.1} parent=5 // pred_region
      %s217 = ssub.s32 %s10, 1
      %p218 = scmp.lt.s32.totalorder %s19, 1
      %s219 = scalar_select %p218, %s19, 1
      %p220 = scmp.lt.s32.totalorder %s20, 0
      %s221 = scalar_select %p220, %s20, 0
      %s222 = smul.addr %s219, 3
      %s223 = sadd.s32 %s221, %s222
      %s224 = smul.addr %s223, 8
      %s225 = scalar_lea.vmem %s0, %s224
      %p226 = pneg %p50
      %p227 = pneg %p47
      %p228 = scmp.lt.s32.totalorder %s19, 1
      %s229 = scalar_select %p228, %s19, 1
      %p230 = scmp.lt.s32.totalorder %s20, 0
      %s231 = scalar_select %p230, %s20, 0
      %s232 = smul.addr %s229, 3
      %s233 = sadd.s32 %s231, %s232
      %s234 = smul.addr %s233, 8
      %s235 = scalar_lea.vmem %s1, %s234
      %p236 = pneg %p78
      %p237 = pneg %p75
      %p238 = scmp.lt.s32.totalorder %s20, 0
      %s239 = scalar_select %p238, %s20, 0
      %s240 = scalar_lea.vmem %s2, %s239
      %p241 = pneg %p104
      %p242 = pneg %p101
      %p243 = scmp.lt.s32.totalorder %s20, 0
      %s244 = scalar_select %p243, %s20, 0
      %s245 = scalar_lea.vmem %s3, %s244
      %p246 = pneg %p130
      %p247 = pneg %p127
      %p248 = pneg %p158
      %p249 = pneg %p155
      %p250 = scmp.lt.s32.totalorder %s19, 1
      %s251 = scalar_select %p250, %s19, 1
      %p252 = scmp.lt.s32.totalorder %s20, 0
      %s253 = scalar_select %p252, %s20, 0
      %s254 = smul.addr %s251, 3
      %s255 = sadd.s32 %s253, %s254
      %s256 = smul.addr %s255, 8
      %s257 = scalar_lea.vmem %s4, %s256
      %p258 = scmp.lt.s32.totalorder %s19, 1
      %s259 = scalar_select %p258, %s19, 1
      %p260 = scmp.lt.s32.totalorder %s20, 0
      %s261 = scalar_select %p260, %s20, 0
      %s262 = smul.addr %s259, 3
      %s263 = sadd.s32 %s261, %s262
      %s264 = smul.addr %s263, 8
      %s265 = scalar_lea.vmem %s0, %s264
      %p266 = scmp.lt.s32.totalorder %s19, 1
      %s267 = scalar_select %p266, %s19, 1
      %p268 = scmp.lt.s32.totalorder %s20, 0
      %s269 = scalar_select %p268, %s20, 0
      %s270 = smul.addr %s267, 3
      %s271 = sadd.s32 %s269, %s270
      %s272 = smul.addr %s271, 8
      %s273 = scalar_lea.vmem %s1, %s272
      %p274 = scmp.lt.s32.totalorder %s20, 0
      %s275 = scalar_select %p274, %s20, 0
      %s276 = scalar_lea.vmem %s2, %s275
      %p277 = scmp.lt.s32.totalorder %s20, 0
      %s278 = scalar_select %p277, %s20, 0
      %s279 = scalar_lea.vmem %s3, %s278
      %p280 = scmp.lt.s32.totalorder %s19, 1
      %s281 = scalar_select %p280, %s19, 1
      %p282 = scmp.lt.s32.totalorder %s20, 0
      %s283 = scalar_select %p282, %s20, 0
      %s284 = smul.addr %s281, 3
      %s285 = sadd.s32 %s283, %s284
      %s286 = smul.addr %s285, 8
      %s287 = scalar_lea.vmem %s4, %s286
      %v288 = vld [vmem:[%s265] sm:$0xff]
      %v289 = vld [vmem:[%s265 + $0x8] sm:$0xff]
      %v290 = vld [vmem:[%s265 + $0x10] sm:$0xf]
      %v291 = vld [vmem:[%s273] sm:$0xff]
      %v292 = vld [vmem:[%s273 + $0x8] sm:$0xff]
      %v293 = vld [vmem:[%s273 + $0x10] sm:$0xf]
      %v294 = vadd.f32 %v288, %v291
      %v295 = vadd.f32 %v289, %v292
      %v296 = vadd.f32 %v290, %v293
      %v297 = vadd.f32 %v294, %v295
      %vm298 = vcmask 1043456
      %v299 = vsel %vm298, %v296, 0.0
      %v300 = vadd.f32 %v297, %v299
      %v301 = vrot.slane %v300, 4
      %v302 = vadd.f32 %v300, %v301
      %v303 = vrot.slane %v302, 2
      %v304 = vadd.f32 %v302, %v303
      %v305 = vrot.slane %v304, 1
      %v306 = vadd.f32 %v304, %v305
      %v307 = vrcp.pop 20.0
      %v308 = vmul.f32 20.0, %v307
      %v309 = vsub.f32 1.0, %v308
      %v310 = vmul.f32 %v307, %v309
      %v311 = vadd.f32 %v307, %v310
      %vm312 = vweird.f32 %v307
      %v313 = vsel %vm312, %v307, %v311
      %v314 = vmul.f32 %v306, %v313
      %v315 = vsub.f32 %v294, %v314
      %v316 = vsub.f32 %v295, %v314
      %v317 = vsub.f32 %v296, %v314
      %v318 = vmul.f32 %v315, %v315
      %v319 = vmul.f32 %v316, %v316
      %v320 = vmul.f32 %v317, %v317
      %v321 = vadd.f32 %v318, %v319
      %v322 = vsel %vm298, %v320, 0.0
      %v323 = vadd.f32 %v321, %v322
      %v324 = vrot.slane %v323, 4
      %v325 = vadd.f32 %v323, %v324
      %v326 = vrot.slane %v325, 2
      %v327 = vadd.f32 %v325, %v326
      %v328 = vrot.slane %v327, 1
      %v329 = vadd.f32 %v327, %v328
      %v330 = vmul.f32 %v329, %v313
      %v331 = vadd.f32 %v330, 1e-05
      %v332 = vrsqrt.pop %v331
      %v333 = vmul.f32 %v332, %v331
      %v334 = vmul.f32 %v333, %v332
      %v335 = vmul.f32 0.5, %v334
      %v336 = vsub.f32 1.5, %v335
      %v337 = vmul.f32 %v332, %v336
      %vm338 = vweird.f32 %v331
      %vm339 = vweird.f32 %v332
      %vm340 = vmor %vm338, %vm339
      %v341 = vsel %vm340, %v332, %v337
      %v342 = vld [vmem:[%s276] sm:$0x1]
      %v343 = vld [vmem:[%s279] sm:$0x1]
      %v344 = vmul.f32 %v342, %v341
      %v345 = vmul.f32 %v314, %v344
      %v346 = vsub.f32 %v343, %v345
      %v348 = vperm.slane %v344, 0
      %v350 = vmul.f32 %v294, %v348
      %v351 = vmul.f32 %v295, %v348
      %v352 = vmul.f32 %v296, %v348
      %v354 = vperm.slane %v346, 0
      %v356 = vadd.f32 %v350, %v354
      %v357 = vadd.f32 %v351, %v354
      %v358 = vadd.f32 %v352, %v354
      %359 = vst [vmem:[%s287] sm:$0xff] %v356
      %360 = vst [vmem:[%s287 + $0x8] sm:$0xff] %v357
      %361 = vst [vmem:[%s287 + $0x10] sm:$0xf] %v358
      %p362 = scmp.lt.s32.totalorder %s19, 1
      %s363 = scalar_select %p362, %s19, 1
      %p364 = scmp.lt.s32.totalorder %s20, 0
      %s365 = scalar_select %p364, %s20, 0
      %s366 = smul.addr %s363, 3
      %s367 = sadd.s32 %s365, %s366
      %s368 = smul.addr %s367, 8
      %s369 = scalar_lea.vmem %s4, %s368
      // Predicated region
      $region37: #{tpu_custom_call.1} parent=35 // pred_check
        %p370 = pneg %p155
      $region38: #{tpu_custom_call.1} parent=35 // pred_check_branch
        %372 = sbr.rel (%p370) target = $region40
      $region39: #{tpu_custom_call.1} parent=35 // pred_region
        _
      $region40: #{tpu_custom_call.1} parent=35 // pred_fallthru
        _
    $region36: #{tpu_custom_call.1} parent=5 // pred_fallthru
      _
    %p373 = scmp.le.s32.totalorder 2, %s10
    // Predicated region
    $region41: #{tpu_custom_call.1} parent=5 // pred_check
      %p374 = pneg %p373
    $region42: #{tpu_custom_call.1} parent=5 // pred_check_branch
      %376 = sbr.rel (%p374) target = $region44
    $region43: #{tpu_custom_call.1} parent=5 // pred_region
      %s377 = ssub.s32 %s10, 2
      // Predicated region
      $region45: #{tpu_custom_call.1} parent=43 // pred_check
        %p378 = pneg %p161
      $region46: #{tpu_custom_call.1} parent=43 // pred_check_branch
        %380 = sbr.rel (%p378) target = $region48
      $region47: #{tpu_custom_call.1} parent=43 // pred_region
        %p381 = scmp.lt.s32.totalorder %s21, 1
        %s382 = scalar_select %p381, %s21, 1
        %p383 = scmp.lt.s32.totalorder %s22, 0
        %s384 = scalar_select %p383, %s22, 0
        %s385 = smul.addr %s382, 3
        %s386 = sadd.s32 %s384, %s385
        %s387 = smul.addr %s386, 8
        %s388 = scalar_lea.vmem %s4, %s387
      $region48: #{tpu_custom_call.1} parent=43 // pred_fallthru
        _
    $region44: #{tpu_custom_call.1} parent=5 // pred_fallthru
      _
  $region6: #{tpu_custom_call.1} parent=0 // loop_footer
    %s14 = sadd.s32 1, %s10
  $region7: #{tpu_custom_call.1} parent=0 // loop_footer_branch
    %9 = sbr.rel target = $region3
  $region8: #{tpu_custom_call.1} parent=0 // loop_exit
    _

</llo_original>
